<compile_context>
chip_gen: v6e
topology: v6e:2x2x1
jax: 0.10.0
libtpu: 0.0.40
codegen_flags: <defaults>
</compile_context>

<pallas_src>
import functools
import math

import jax
import jax.numpy as jnp
from jax.experimental import pallas as pl
from jax.experimental.pallas import tpu as pltpu

_MIN_PALLAS_BYTES = 128 * 1024  # below this, plain JAX wins (launch overhead)


@functools.lru_cache(maxsize=1)
def _chip_tuning():
    """(block_byte_budget, vmem_limit_bytes, split_for_two_cores) per chip."""
    kind = ""
    try:
        kind = jax.devices()[0].device_kind.lower()
    except Exception:
        pass
    if "v7" in kind:
        # 4 pipeline buffers x 6 MiB = 24 MiB; raise scoped VMEM (64 MiB phys).
        # Two TensorCores per chip -> make sure the grid has >= 2 blocks.
        return 6 * 1024 * 1024, 40 << 20, True
    if "v6" in kind:
        # 4 x 4 MiB = 16 MiB, safely under v6e's 32 MiB default scoped VMEM.
        return 4 * 1024 * 1024, None, False
    # v5e / unknown: 4 x 2 MiB = 8 MiB, under the 16 MiB default scoped VMEM.
    return 2 * 1024 * 1024, None, False


def _sublane_multiple(dtype) -> int:
    # Native sublane tiling: f32 -> 8, bf16 -> 16, int8/uint8 -> 32.
    return max(8, 32 // max(1, jnp.dtype(dtype).itemsize))


def _scale_kernel(scale_ref, x_ref, o_ref):
    # scale lives in SMEM as a (1,) f32; multiply in f32, cast to output dtype.
    s = scale_ref[0]
    o_ref[...] = (x_ref[...].astype(jnp.float32) * s).astype(o_ref.dtype)


def scale_forward(x: jax.Array, scale) -> jax.Array:
    """Elementwise x * scale (Pallas TPU kernel), PyTorch promotion semantics."""
    in_dtype = x.dtype
    out_dtype = in_dtype if jnp.issubdtype(in_dtype, jnp.floating) else jnp.float32
    total = math.prod(x.shape) if x.shape else 1
    in_itemsize = jnp.dtype(in_dtype).itemsize
    out_itemsize = jnp.dtype(out_dtype).itemsize

    # Tiny or awkward (not divisible by a 128-lane) sizes: plain JAX fallback.
    # XLA's fused elementwise multiply is already at the HBM roofline there.
    if total * in_itemsize < _MIN_PALLAS_BYTES or total % 128 != 0:
        return (x.astype(jnp.float32) * jnp.float32(scale)).astype(out_dtype)

    block_bytes, vmem_limit, split_two = _chip_tuning()

    # Largest lane width (multiple of 128) that divides total -> copy-free
    # reshape to a lane-dense 2D slab, no padding needed.
    lane = 128
    for cand in (1024, 512, 256, 128):
        if total % cand == 0:
            lane = cand
            break
    rows = total // lane

    # Row-block alignment must satisfy both input and output native tilings.
    sub = max(_sublane_multiple(in_dtype), _sublane_multiple(out_dtype))

    # Row budget from the per-chip block byte budget (based on the wider of
    # the input/output element sizes so neither pipeline buffer overshoots).
    bytes_per_row = lane * max(in_itemsize, out_itemsize)
    budget_rows = max(sub, (block_bytes // bytes_per_row) // sub * sub)

    if rows > budget_rows:
        block_rows = budget_rows
    elif split_two and rows >= 2 * sub:
        # Single-block case on a 2-TensorCore chip: split so both cores work.
        block_rows = -(-(-(-rows // 2)) // sub) * sub  # round_up(ceil(rows/2), sub)
    else:
        block_rows = rows  # whole-array block (valid even if rows % sub != 0)

    grid = (pl.cdiv(rows, block_rows),)  # ragged last block is masked by Pallas

    x2d = x.reshape(rows, lane)
    scale_arr = jnp.asarray([scale], dtype=jnp.float32)

    out2d = pl.pallas_call(
        _scale_kernel,
        out_shape=jax.ShapeDtypeStruct((rows, lane), out_dtype),
        grid=grid,
        in_specs=[
            pl.BlockSpec(memory_space=pltpu.MemorySpace.SMEM),   # scale scalar
            pl.BlockSpec((block_rows, lane), lambda i: (i, 0)),  # x tile
        ],
        out_specs=pl.BlockSpec((block_rows, lane), lambda i: (i, 0)),
        compiler_params=pltpu.CompilerParams(
            dimension_semantics=("parallel",),   # shard grid across TCs on v7x
            vmem_limit_bytes=vmem_limit,
        ),
    )(scale_arr, x2d)

    return out2d.reshape(x.shape)


if __name__ == "__main__":
    key = jax.random.PRNGKey(0)
    k1, k2, k3 = jax.random.split(key, 3)
    scale = 1.0 / 255.0  # value used for this module in the PPO script

    # 1) Module-sized example (2, 4, 16, 16): tiny-array plain-JAX path.
    x_small = jax.random.uniform(k1, (2, 4, 16, 16), jnp.float32, 0.0, 255.0)
    out_small = jax.block_until_ready(scale_forward(x_small, scale))
    assert out_small.shape == x_small.shape and out_small.dtype == x_small.dtype
    assert jnp.allclose(out_small, x_small * scale, rtol=1e-6, atol=1e-6)

    # 2) Atari-sized float frame stack: exercises the Pallas kernel.
    x_f32 = jax.random.uniform(k2, (8, 4, 84, 84), jnp.float32, 0.0, 255.0)
    out_f32 = jax.block_until_ready(scale_forward(x_f32, scale))
    assert out_f32.shape == x_f32.shape and out_f32.dtype == jnp.float32
    assert jnp.allclose(out_f32, x_f32 * scale, rtol=1e-6, atol=1e-6)

    # 3) uint8 frames (typical input for scale=1/255): promotes to float32.
    x_u8 = jax.random.randint(k3, (8, 4, 84, 84), 0, 256, dtype=jnp.int32).astype(jnp.uint8)
    out_u8 = jax.block_until_ready(scale_forward(x_u8, scale))
    assert out_u8.shape == x_u8.shape and out_u8.dtype == jnp.float32
    assert jnp.allclose(out_u8, x_u8.astype(jnp.float32) * scale, rtol=1e-6, atol=1e-6)

    # 4) Awkward (non-128-divisible) size: plain-JAX fallback path.
    x_odd = jax.random.normal(k1, (3, 5, 7), jnp.float32)
    out_odd = jax.block_until_ready(scale_forward(x_odd, scale))
    assert jnp.allclose(out_odd, x_odd * scale, rtol=1e-6, atol=1e-6)

    print("KERNEL_OK")
</pallas_src>

<mosaic_0001>
module attributes {stable_mosaic.version = 11 : i64} {
  func.func @_scale_kernel(%arg0: i32, %arg1: memref<1xf32, #tpu.memory_space<smem>>, %arg2: memref<441x512xf32, #tpu.memory_space<vmem>>, %arg3: memref<441x512xf32, #tpu.memory_space<vmem>>) attributes {dimension_semantics = [#tpu.dimension_semantics<parallel>], iteration_bounds = array<i64: 1>, scalar_prefetch = 0 : i64, scratch_operands = 0 : i64, tpu.core_type = #tpu.core_type<tc>, window_params = [{transform_indices = @transform_0, window_bounds = array<i64: 1>}, {transform_indices = @transform_1, window_bounds = array<i64: 441, 512>}, {transform_indices = @transform_2, window_bounds = array<i64: 441, 512>}]} {
    %c0 = arith.constant 0 : index
    %0 = memref.load %arg1[%c0] : memref<1xf32, #tpu.memory_space<smem>>
    %c0_0 = arith.constant 0 : index
    %c0_1 = arith.constant 0 : index
    %1 = vector.load %arg2[%c0_0, %c0_1] : memref<441x512xf32, #tpu.memory_space<vmem>>, vector<441x512xf32>
    %2 = vector.broadcast %0 : f32 to vector<441x512xf32>
    %3 = arith.mulf %1, %2 : vector<441x512xf32>
    %c0_2 = arith.constant 0 : index
    %c0_3 = arith.constant 0 : index
    %4 = vector.load %arg3[%c0_2, %c0_3] : memref<441x512xf32, #tpu.memory_space<vmem>>, vector<441x512xf32>
    tpu.vector_store %arg3[%c0_2, %c0_3], %3 {strides = array<i32>} : memref<441x512xf32, #tpu.memory_space<vmem>>, vector<441x512xf32>,
    return
  }
  func.func @transform_0(%arg0: i32) -> i32 {
    %c0_i32 = arith.constant 0 : i32
    %c0_i32_0 = arith.constant 0 : i32
    return %c0_i32 : i32
  }
  func.func @transform_1(%arg0: i32) -> (i32, i32) {
    %c0_i32 = arith.constant 0 : i32
    %c0_i32_0 = arith.constant 0 : i32
    return %arg0, %c0_i32 : i32, i32
  }
  func.func @transform_2(%arg0: i32) -> (i32, i32) {
    %c0_i32 = arith.constant 0 : i32
    %c0_i32_0 = arith.constant 0 : i32
    return %arg0, %c0_i32 : i32, i32
  }
}

</mosaic_0001>

<llo_original>
// kernel: tpu_custom_call.1
$region0: #{tpu_custom_call.1}
  #allocation0 [shape = 'u32[]', space=smem, size = 0x4, offset = 0x4, fixed_abs, tag = 'smem constant byte address 0x4 - core index']
  #allocation1 [shape = 'u32[144,128]{1,0:T(1,128)}', space=vmem, size = 0x12000, scoped, tag = 'internal scratch']
  #allocation2 [shape = 'f32[1]{0:T(128)S(6)}', space=smem, size = 0x200, scoped, tag = 'scoped memory for tpu_custom_call.1']
  %s0 = inlined_call_operand.<no memory space> [shape: f32[1], index: 0, kind: input, shape index: {}]
  %s1 = inlined_call_operand.hbm [shape: f32[441,512], index: 1, kind: input, shape index: {}]
  %s2 = inlined_call_operand.hbm [shape: f32[441,512], index: 2, kind: output, shape index: {}]
  %s3 = sld [smem:[#allocation0]]
  $region22: #{tpu_custom_call.1} parent=0
    _
  %s5 = ssub.s32 1, %s3
  %s6 = scalar_select 0, %s5, %s3
  %7 = sst [smem:[#allocation2]] %s0
  $region1: #{tpu_custom_call.1} parent=0
    #allocation3 [shape = 'u8[917504]{0}', space=vmem, size = 0xe0000, scoped, tag = 'input window, operand 1, single buffered']
    #allocation4 [shape = 's32[1]{0}', space=sflag, size = 0x4, scoped, tag = 'scoped memory for tpu_custom_call.1']
    #allocation5 [shape = 's32[1]{0}', space=sflag, size = 0x4, scoped, tag = 'scoped memory for tpu_custom_call.1']
    #allocation6 [shape = 'u8[917504]{0}', space=vmem, size = 0xe0000, scoped, tag = 'output window, operand 0, single buffered']
    %8 = vsyncpa [#allocation4], 0
    %9 = vsyncpa [#allocation5], 0
    // Predicated region
    $region2: #{tpu_custom_call.1} parent=1 // pred_check
      _
    $region3: #{tpu_custom_call.1} parent=1 // pred_check_branch
      %11 = sbr.rel (0) target = $region5
    $region4: #{tpu_custom_call.1} parent=1 // pred_region
      _
    $region5: #{tpu_custom_call.1} parent=1 // pred_fallthru
      _
    // Predicated region
    $region6: #{tpu_custom_call.1} parent=1 // pred_check
      _
    $region7: #{tpu_custom_call.1} parent=1 // pred_check_branch
      %13 = sbr.rel (0) target = $region9
    $region8: #{tpu_custom_call.1} parent=1 // pred_region
      %s15 = ssub.s32 28672, 28672
      %16 = vsyncadd [#allocation4], %s15
      %s17 = sshll.u32 [#allocation3], 4
      %s18 = int_to_ptr.vmem [resolvable:$true] %s17
      %23 = dma.hbm_to_vmem [thread:$0]  %s1, 28672, %s18, [#allocation4], 512, 512, 32
    $region9: #{tpu_custom_call.1} parent=1 // pred_fallthru
      _
    // Predicated region
    $region10: #{tpu_custom_call.1} parent=1 // pred_check
      _
    $region11: #{tpu_custom_call.1} parent=1 // pred_check_branch
      %25 = sbr.rel (0) target = $region13
    $region12: #{tpu_custom_call.1} parent=1 // pred_region
      %26 = dma.done [#allocation4], 28672
    $region13: #{tpu_custom_call.1} parent=1 // pred_fallthru
      _
    %s27 = sld [smem:[#allocation2]]
    %v28 = vld [vmem:[#allocation3] sm:$0xff]
    %v29 = vld [vmem:[#allocation3 + $0x8] sm:$0xff]
    %v30 = vld [vmem:[#allocation3 + $0x10] sm:$0xff]
    %v31 = vld [vmem:[#allocation3 + $0x18] sm:$0xff]
    %v32 = vld [vmem:[#allocation3 + $0x20] sm:$0xff]
    %v33 = vld [vmem:[#allocation3 + $0x28] sm:$0xff]
    %v34 = vld [vmem:[#allocation3 + $0x30] sm:$0xff]
    %v35 = vld [vmem:[#allocation3 + $0x38] sm:$0xff]
    %v36 = vld [vmem:[#allocation3 + $0x40] sm:$0xff]
    %v37 = vld [vmem:[#allocation3 + $0x48] sm:$0xff]
    %v38 = vld [vmem:[#allocation3 + $0x50] sm:$0xff]
    %v39 = vld [vmem:[#allocation3 + $0x58] sm:$0xff]
    %v40 = vld [vmem:[#allocation3 + $0x60] sm:$0xff]
    %v41 = vld [vmem:[#allocation3 + $0x68] sm:$0xff]
    %v42 = vld [vmem:[#allocation3 + $0x70] sm:$0xff]
    %v43 = vld [vmem:[#allocation3 + $0x78] sm:$0xff]
    %v44 = vld [vmem:[#allocation3 + $0x80] sm:$0xff]
    %v45 = vld [vmem:[#allocation3 + $0x88] sm:$0xff]
    %v46 = vld [vmem:[#allocation3 + $0x90] sm:$0xff]
    %v47 = vld [vmem:[#allocation3 + $0x98] sm:$0xff]
    %v48 = vld [vmem:[#allocation3 + $0xa0] sm:$0xff]
    %v49 = vld [vmem:[#allocation3 + $0xa8] sm:$0xff]
    %v50 = vld [vmem:[#allocation3 + $0xb0] sm:$0xff]
    %v51 = vld [vmem:[#allocation3 + $0xb8] sm:$0xff]
    %v52 = vld [vmem:[#allocation3 + $0xc0] sm:$0xff]
    %v53 = vld [vmem:[#allocation3 + $0xc8] sm:$0xff]
    %v54 = vld [vmem:[#allocation3 + $0xd0] sm:$0xff]
    %v55 = vld [vmem:[#allocation3 + $0xd8] sm:$0xff]
    %v56 = vld [vmem:[#allocation3 + $0xe0] sm:$0xff]
    %v57 = vld [vmem:[#allocation3 + $0xe8] sm:$0xff]
    %v58 = vld [vmem:[#allocation3 + $0xf0] sm:$0xff]
    %v59 = vld [vmem:[#allocation3 + $0xf8] sm:$0xff]
    %v60 = vld [vmem:[#allocation3 + $0x100] sm:$0xff]
    %v61 = vld [vmem:[#allocation3 + $0x108] sm:$0xff]
    %v62 = vld [vmem:[#allocation3 + $0x110] sm:$0xff]
    %v63 = vld [vmem:[#allocation3 + $0x118] sm:$0xff]
    %v64 = vld [vmem:[#allocation3 + $0x120] sm:$0xff]
    %v65 = vld [vmem:[#allocation3 + $0x128] sm:$0xff]
    %v66 = vld [vmem:[#allocation3 + $0x130] sm:$0xff]
    %v67 = vld [vmem:[#allocation3 + $0x138] sm:$0xff]
    %v68 = vld [vmem:[#allocation3 + $0x140] sm:$0xff]
    %v69 = vld [vmem:[#allocation3 + $0x148] sm:$0xff]
    %v70 = vld [vmem:[#allocation3 + $0x150] sm:$0xff]
    %v71 = vld [vmem:[#allocation3 + $0x158] sm:$0xff]
    %v72 = vld [vmem:[#allocation3 + $0x160] sm:$0xff]
    %v73 = vld [vmem:[#allocation3 + $0x168] sm:$0xff]
    %v74 = vld [vmem:[#allocation3 + $0x170] sm:$0xff]
    %v75 = vld [vmem:[#allocation3 + $0x178] sm:$0xff]
    %v76 = vld [vmem:[#allocation3 + $0x180] sm:$0xff]
    %v77 = vld [vmem:[#allocation3 + $0x188] sm:$0xff]
    %v78 = vld [vmem:[#allocation3 + $0x190] sm:$0xff]
    %v79 = vld [vmem:[#allocation3 + $0x198] sm:$0xff]
    %v80 = vld [vmem:[#allocation3 + $0x1a0] sm:$0xff]
    %v81 = vld [vmem:[#allocation3 + $0x1a8] sm:$0xff]
    %v82 = vld [vmem:[#allocation3 + $0x1b0] sm:$0xff]
    %v83 = vld [vmem:[#allocation3 + $0x1b8] sm:$0xff]
    %v84 = vld [vmem:[#allocation3 + $0x1c0] sm:$0xff]
    %v85 = vld [vmem:[#allocation3 + $0x1c8] sm:$0xff]
    %v86 = vld [vmem:[#allocation3 + $0x1d0] sm:$0xff]
    %v87 = vld [vmem:[#allocation3 + $0x1d8] sm:$0xff]
    %v88 = vld [vmem:[#allocation3 + $0x1e0] sm:$0xff]
    %v89 = vld [vmem:[#allocation3 + $0x1e8] sm:$0xff]
    %v90 = vld [vmem:[#allocation3 + $0x1f0] sm:$0xff]
    %v91 = vld [vmem:[#allocation3 + $0x1f8] sm:$0xff]
    %v92 = vld [vmem:[#allocation3 + $0x200] sm:$0xff]
    %v93 = vld [vmem:[#allocation3 + $0x208] sm:$0xff]
    %v94 = vld [vmem:[#allocation3 + $0x210] sm:$0xff]
    %v95 = vld [vmem:[#allocation3 + $0x218] sm:$0xff]
    %v96 = vld [vmem:[#allocation3 + $0x220] sm:$0xff]
    %v97 = vld [vmem:[#allocation3 + $0x228] sm:$0xff]
    %v98 = vld [vmem:[#allocation3 + $0x230] sm:$0xff]
    %v99 = vld [vmem:[#allocation3 + $0x238] sm:$0xff]
    %v100 = vld [vmem:[#allocation3 + $0x240] sm:$0xff]
    %v101 = vld [vmem:[#allocation3 + $0x248] sm:$0xff]
    %v102 = vld [vmem:[#allocation3 + $0x250] sm:$0xff]
    %v103 = vld [vmem:[#allocation3 + $0x258] sm:$0xff]
    %v104 = vld [vmem:[#allocation3 + $0x260] sm:$0xff]
    %v105 = vld [vmem:[#allocation3 + $0x268] sm:$0xff]
    %v106 = vld [vmem:[#allocation3 + $0x270] sm:$0xff]
    %v107 = vld [vmem:[#allocation3 + $0x278] sm:$0xff]
    %v108 = vld [vmem:[#allocation3 + $0x280] sm:$0xff]
    %v109 = vld [vmem:[#allocation3 + $0x288] sm:$0xff]
    %v110 = vld [vmem:[#allocation3 + $0x290] sm:$0xff]
    %v111 = vld [vmem:[#allocation3 + $0x298] sm:$0xff]
    %v112 = vld [vmem:[#allocation3 + $0x2a0] sm:$0xff]
    %v113 = vld [vmem:[#allocation3 + $0x2a8] sm:$0xff]
    %v114 = vld [vmem:[#allocation3 + $0x2b0] sm:$0xff]
    %v115 = vld [vmem:[#allocation3 + $0x2b8] sm:$0xff]
    %v116 = vld [vmem:[#allocation3 + $0x2c0] sm:$0xff]
    %v117 = vld [vmem:[#allocation3 + $0x2c8] sm:$0xff]
    %v118 = vld [vmem:[#allocation3 + $0x2d0] sm:$0xff]
    %v119 = vld [vmem:[#allocation3 + $0x2d8] sm:$0xff]
    %v120 = vld [vmem:[#allocation3 + $0x2e0] sm:$0xff]
    %v121 = vld [vmem:[#allocation3 + $0x2e8] sm:$0xff]
    %v122 = vld [vmem:[#allocation3 + $0x2f0] sm:$0xff]
    %v123 = vld [vmem:[#allocation3 + $0x2f8] sm:$0xff]
    %v124 = vld [vmem:[#allocation3 + $0x300] sm:$0xff]
    %v125 = vld [vmem:[#allocation3 + $0x308] sm:$0xff]
    %v126 = vld [vmem:[#allocation3 + $0x310] sm:$0xff]
    %v127 = vld [vmem:[#allocation3 + $0x318] sm:$0xff]
    %v128 = vld [vmem:[#allocation3 + $0x320] sm:$0xff]
    %v129 = vld [vmem:[#allocation3 + $0x328] sm:$0xff]
    %v130 = vld [vmem:[#allocation3 + $0x330] sm:$0xff]
    %v131 = vld [vmem:[#allocation3 + $0x338] sm:$0xff]
    %v132 = vld [vmem:[#allocation3 + $0x340] sm:$0xff]
    %v133 = vld [vmem:[#allocation3 + $0x348] sm:$0xff]
    %v134 = vld [vmem:[#allocation3 + $0x350] sm:$0xff]
    %v135 = vld [vmem:[#allocation3 + $0x358] sm:$0xff]
    %v136 = vld [vmem:[#allocation3 + $0x360] sm:$0xff]
    %v137 = vld [vmem:[#allocation3 + $0x368] sm:$0xff]
    %v138 = vld [vmem:[#allocation3 + $0x370] sm:$0xff]
    %v139 = vld [vmem:[#allocation3 + $0x378] sm:$0xff]
    %v140 = vld [vmem:[#allocation3 + $0x380] sm:$0xff]
    %v141 = vld [vmem:[#allocation3 + $0x388] sm:$0xff]
    %v142 = vld [vmem:[#allocation3 + $0x390] sm:$0xff]
    %v143 = vld [vmem:[#allocation3 + $0x398] sm:$0xff]
    %v144 = vld [vmem:[#allocation3 + $0x3a0] sm:$0xff]
    %v145 = vld [vmem:[#allocation3 + $0x3a8] sm:$0xff]
    %v146 = vld [vmem:[#allocation3 + $0x3b0] sm:$0xff]
    %v147 = vld [vmem:[#allocation3 + $0x3b8] sm:$0xff]
    %v148 = vld [vmem:[#allocation3 + $0x3c0] sm:$0xff]
    %v149 = vld [vmem:[#allocation3 + $0x3c8] sm:$0xff]
    %v150 = vld [vmem:[#allocation3 + $0x3d0] sm:$0xff]
    %v151 = vld [vmem:[#allocation3 + $0x3d8] sm:$0xff]
    %v152 = vld [vmem:[#allocation3 + $0x3e0] sm:$0xff]
    %v153 = vld [vmem:[#allocation3 + $0x3e8] sm:$0xff]
    %v154 = vld [vmem:[#allocation3 + $0x3f0] sm:$0xff]
    %v155 = vld [vmem:[#allocation3 + $0x3f8] sm:$0xff]
    %v156 = vld [vmem:[#allocation3 + $0x400] sm:$0xff]
    %v157 = vld [vmem:[#allocation3 + $0x408] sm:$0xff]
    %v158 = vld [vmem:[#allocation3 + $0x410] sm:$0xff]
    %v159 = vld [vmem:[#allocation3 + $0x418] sm:$0xff]
    %v160 = vld [vmem:[#allocation3 + $0x420] sm:$0xff]
    %v161 = vld [vmem:[#allocation3 + $0x428] sm:$0xff]
    %v162 = vld [vmem:[#allocation3 + $0x430] sm:$0xff]
    %v163 = vld [vmem:[#allocation3 + $0x438] sm:$0xff]
    %v164 = vld [vmem:[#allocation3 + $0x440] sm:$0xff]
    %v165 = vld [vmem:[#allocation3 + $0x448] sm:$0xff]
    %v166 = vld [vmem:[#allocation3 + $0x450] sm:$0xff]
    %v167 = vld [vmem:[#allocation3 + $0x458] sm:$0xff]
    %v168 = vld [vmem:[#allocation3 + $0x460] sm:$0xff]
    %v169 = vld [vmem:[#allocation3 + $0x468] sm:$0xff]
    %v170 = vld [vmem:[#allocation3 + $0x470] sm:$0xff]
    %v171 = vld [vmem:[#allocation3 + $0x478] sm:$0xff]
    %v172 = vld [vmem:[#allocation3 + $0x480] sm:$0xff]
    %v173 = vld [vmem:[#allocation3 + $0x488] sm:$0xff]
    %v174 = vld [vmem:[#allocation3 + $0x490] sm:$0xff]
    %v175 = vld [vmem:[#allocation3 + $0x498] sm:$0xff]
    %v176 = vld [vmem:[#allocation3 + $0x4a0] sm:$0xff]
    %v177 = vld [vmem:[#allocation3 + $0x4a8] sm:$0xff]
    %v178 = vld [vmem:[#allocation3 + $0x4b0] sm:$0xff]
    %v179 = vld [vmem:[#allocation3 + $0x4b8] sm:$0xff]
    %v180 = vld [vmem:[#allocation3 + $0x4c0] sm:$0xff]
    %v181 = vld [vmem:[#allocation3 + $0x4c8] sm:$0xff]
    %v182 = vld [vmem:[#allocation3 + $0x4d0] sm:$0xff]
    %v183 = vld [vmem:[#allocation3 + $0x4d8] sm:$0xff]
    %v184 = vld [vmem:[#allocation3 + $0x4e0] sm:$0xff]
    %v185 = vld [vmem:[#allocation3 + $0x4e8] sm:$0xff]
    %v186 = vld [vmem:[#allocation3 + $0x4f0] sm:$0xff]
    %v187 = vld [vmem:[#allocation3 + $0x4f8] sm:$0xff]
    %v188 = vld [vmem:[#allocation3 + $0x500] sm:$0xff]
    %v189 = vld [vmem:[#allocation3 + $0x508] sm:$0xff]
    %v190 = vld [vmem:[#allocation3 + $0x510] sm:$0xff]
    %v191 = vld [vmem:[#allocation3 + $0x518] sm:$0xff]
    %v192 = vld [vmem:[#allocation3 + $0x520] sm:$0xff]
    %v193 = vld [vmem:[#allocation3 + $0x528] sm:$0xff]
    %v194 = vld [vmem:[#allocation3 + $0x530] sm:$0xff]
    %v195 = vld [vmem:[#allocation3 + $0x538] sm:$0xff]
    %v196 = vld [vmem:[#allocation3 + $0x540] sm:$0xff]
    %v197 = vld [vmem:[#allocation3 + $0x548] sm:$0xff]
    %v198 = vld [vmem:[#allocation3 + $0x550] sm:$0xff]
    %v199 = vld [vmem:[#allocation3 + $0x558] sm:$0xff]
    %v200 = vld [vmem:[#allocation3 + $0x560] sm:$0xff]
    %v201 = vld [vmem:[#allocation3 + $0x568] sm:$0xff]
    %v202 = vld [vmem:[#allocation3 + $0x570] sm:$0xff]
    %v203 = vld [vmem:[#allocation3 + $0x578] sm:$0xff]
    %v204 = vld [vmem:[#allocation3 + $0x580] sm:$0xff]
    %v205 = vld [vmem:[#allocation3 + $0x588] sm:$0xff]
    %v206 = vld [vmem:[#allocation3 + $0x590] sm:$0xff]
    %v207 = vld [vmem:[#allocation3 + $0x598] sm:$0xff]
    %v208 = vld [vmem:[#allocation3 + $0x5a0] sm:$0xff]
    %v209 = vld [vmem:[#allocation3 + $0x5a8] sm:$0xff]
    %v210 = vld [vmem:[#allocation3 + $0x5b0] sm:$0xff]
    %v211 = vld [vmem:[#allocation3 + $0x5b8] sm:$0xff]
    %v212 = vld [vmem:[#allocation3 + $0x5c0] sm:$0xff]
    %v213 = vld [vmem:[#allocation3 + $0x5c8] sm:$0xff]
    %v214 = vld [vmem:[#allocation3 + $0x5d0] sm:$0xff]
    %v215 = vld [vmem:[#allocation3 + $0x5d8] sm:$0xff]
    %v216 = vld [vmem:[#allocation3 + $0x5e0] sm:$0xff]
    %v217 = vld [vmem:[#allocation3 + $0x5e8] sm:$0xff]
    %v218 = vld [vmem:[#allocation3 + $0x5f0] sm:$0xff]
    %v219 = vld [vmem:[#allocation3 + $0x5f8] sm:$0xff]
    %v220 = vld [vmem:[#allocation3 + $0x600] sm:$0xff]
    %v221 = vld [vmem:[#allocation3 + $0x608] sm:$0xff]
    %v222 = vld [vmem:[#allocation3 + $0x610] sm:$0xff]
    %v223 = vld [vmem:[#allocation3 + $0x618] sm:$0xff]
    %v224 = vld [vmem:[#allocation3 + $0x620] sm:$0xff]
    %v225 = vld [vmem:[#allocation3 + $0x628] sm:$0xff]
    %v226 = vld [vmem:[#allocation3 + $0x630] sm:$0xff]
    %v227 = vld [vmem:[#allocation3 + $0x638] sm:$0xff]
    %v228 = vld [vmem:[#allocation3 + $0x640] sm:$0xff]
    %v229 = vld [vmem:[#allocation3 + $0x648] sm:$0xff]
    %v230 = vld [vmem:[#allocation3 + $0x650] sm:$0xff]
    %v231 = vld [vmem:[#allocation3 + $0x658] sm:$0xff]
    %v232 = vld [vmem:[#allocation3 + $0x660] sm:$0xff]
    %v233 = vld [vmem:[#allocation3 + $0x668] sm:$0xff]
    %v234 = vld [vmem:[#allocation3 + $0x670] sm:$0xff]
    %v235 = vld [vmem:[#allocation3 + $0x678] sm:$0xff]
    %v236 = vld [vmem:[#allocation3 + $0x680] sm:$0xff]
    %v237 = vld [vmem:[#allocation3 + $0x688] sm:$0xff]
    %v238 = vld [vmem:[#allocation3 + $0x690] sm:$0xff]
    %v239 = vld [vmem:[#allocation3 + $0x698] sm:$0xff]
    %v240 = vld [vmem:[#allocation3 + $0x6a0] sm:$0xff]
    %v241 = vld [vmem:[#allocation3 + $0x6a8] sm:$0xff]
    %v242 = vld [vmem:[#allocation3 + $0x6b0] sm:$0xff]
    %v243 = vld [vmem:[#allocation3 + $0x6b8] sm:$0xff]
    %v244 = vld [vmem:[#allocation3 + $0x6c0] sm:$0xff]
    %v245 = vld [vmem:[#allocation3 + $0x6c8] sm:$0xff]
    %v246 = vld [vmem:[#allocation3 + $0x6d0] sm:$0xff]
    %v247 = vld [vmem:[#allocation3 + $0x6d8] sm:$0xff]
    %v248 = vld [vmem:[#allocation3 + $0x6e0] sm:$0x1]
    %v249 = vld [vmem:[#allocation3 + $0x6e8] sm:$0x1]
    %v250 = vld [vmem:[#allocation3 + $0x6f0] sm:$0x1]
    %v251 = vld [vmem:[#allocation3 + $0x6f8] sm:$0x1]
    %v252 = vstv %s27
    %v253 = vmul.f32 %v28, %v252
    %v254 = vmul.f32 %v29, %v252
    %v255 = vmul.f32 %v30, %v252
    %v256 = vmul.f32 %v31, %v252
    %v257 = vmul.f32 %v32, %v252
    %v258 = vmul.f32 %v33, %v252
    %v259 = vmul.f32 %v34, %v252
    %v260 = vmul.f32 %v35, %v252
    %v261 = vmul.f32 %v36, %v252
    %v262 = vmul.f32 %v37, %v252
    %v263 = vmul.f32 %v38, %v252
    %v264 = vmul.f32 %v39, %v252
    %v265 = vmul.f32 %v40, %v252
    %v266 = vmul.f32 %v41, %v252
    %v267 = vmul.f32 %v42, %v252
    %v268 = vmul.f32 %v43, %v252
    %v269 = vmul.f32 %v44, %v252
    %v270 = vmul.f32 %v45, %v252
    %v271 = vmul.f32 %v46, %v252
    %v272 = vmul.f32 %v47, %v252
    %v273 = vmul.f32 %v48, %v252
    %v274 = vmul.f32 %v49, %v252
    %v275 = vmul.f32 %v50, %v252
    %v276 = vmul.f32 %v51, %v252
    %v277 = vmul.f32 %v52, %v252
    %v278 = vmul.f32 %v53, %v252
    %v279 = vmul.f32 %v54, %v252
    %v280 = vmul.f32 %v55, %v252
    %v281 = vmul.f32 %v56, %v252
    %v282 = vmul.f32 %v57, %v252
    %v283 = vmul.f32 %v58, %v252
    %v284 = vmul.f32 %v59, %v252
    %v285 = vmul.f32 %v60, %v252
    %v286 = vmul.f32 %v61, %v252
    %v287 = vmul.f32 %v62, %v252
    %v288 = vmul.f32 %v63, %v252
    %v289 = vmul.f32 %v64, %v252
    %v290 = vmul.f32 %v65, %v252
    %v291 = vmul.f32 %v66, %v252
    %v292 = vmul.f32 %v67, %v252
    %v293 = vmul.f32 %v68, %v252
    %v294 = vmul.f32 %v69, %v252
    %v295 = vmul.f32 %v70, %v252
    %v296 = vmul.f32 %v71, %v252
    %v297 = vmul.f32 %v72, %v252
    %v298 = vmul.f32 %v73, %v252
    %v299 = vmul.f32 %v74, %v252
    %v300 = vmul.f32 %v75, %v252
    %v301 = vmul.f32 %v76, %v252
    %v302 = vmul.f32 %v77, %v252
    %v303 = vmul.f32 %v78, %v252
    %v304 = vmul.f32 %v79, %v252
    %v305 = vmul.f32 %v80, %v252
    %v306 = vmul.f32 %v81, %v252
    %v307 = vmul.f32 %v82, %v252
    %v308 = vmul.f32 %v83, %v252
    %v309 = vmul.f32 %v84, %v252
    %v310 = vmul.f32 %v85, %v252
    %v311 = vmul.f32 %v86, %v252
    %v312 = vmul.f32 %v87, %v252
    %v313 = vmul.f32 %v88, %v252
    %v314 = vmul.f32 %v89, %v252
    %v315 = vmul.f32 %v90, %v252
    %v316 = vmul.f32 %v91, %v252
    %v317 = vmul.f32 %v92, %v252
    %v318 = vmul.f32 %v93, %v252
    %v319 = vmul.f32 %v94, %v252
    %v320 = vmul.f32 %v95, %v252
    %v321 = vmul.f32 %v96, %v252
    %v322 = vmul.f32 %v97, %v252
    %v323 = vmul.f32 %v98, %v252
    %v324 = vmul.f32 %v99, %v252
    %v325 = vmul.f32 %v100, %v252
    %v326 = vmul.f32 %v101, %v252
    %v327 = vmul.f32 %v102, %v252
    %v328 = vmul.f32 %v103, %v252
    %v329 = vmul.f32 %v104, %v252
    %v330 = vmul.f32 %v105, %v252
    %v331 = vmul.f32 %v106, %v252
    %v332 = vmul.f32 %v107, %v252
    %v333 = vmul.f32 %v108, %v252
    %v334 = vmul.f32 %v109, %v252
    %v335 = vmul.f32 %v110, %v252
    %v336 = vmul.f32 %v111, %v252
    %v337 = vmul.f32 %v112, %v252
    %v338 = vmul.f32 %v113, %v252
    %v339 = vmul.f32 %v114, %v252
    %v340 = vmul.f32 %v115, %v252
    %v341 = vmul.f32 %v116, %v252
    %v342 = vmul.f32 %v117, %v252
    %v343 = vmul.f32 %v118, %v252
    %v344 = vmul.f32 %v119, %v252
    %v345 = vmul.f32 %v120, %v252
    %v346 = vmul.f32 %v121, %v252
    %v347 = vmul.f32 %v122, %v252
    %v348 = vmul.f32 %v123, %v252
    %v349 = vmul.f32 %v124, %v252
    %v350 = vmul.f32 %v125, %v252
    %v351 = vmul.f32 %v126, %v252
    %v352 = vmul.f32 %v127, %v252
    %v353 = vmul.f32 %v128, %v252
    %v354 = vmul.f32 %v129, %v252
    %v355 = vmul.f32 %v130, %v252
    %v356 = vmul.f32 %v131, %v252
    %v357 = vmul.f32 %v132, %v252
    %v358 = vmul.f32 %v133, %v252
    %v359 = vmul.f32 %v134, %v252
    %v360 = vmul.f32 %v135, %v252
    %v361 = vmul.f32 %v136, %v252
    %v362 = vmul.f32 %v137, %v252
    %v363 = vmul.f32 %v138, %v252
    %v364 = vmul.f32 %v139, %v252
    %v365 = vmul.f32 %v140, %v252
    %v366 = vmul.f32 %v141, %v252
    %v367 = vmul.f32 %v142, %v252
    %v368 = vmul.f32 %v143, %v252
    %v369 = vmul.f32 %v144, %v252
    %v370 = vmul.f32 %v145, %v252
    %v371 = vmul.f32 %v146, %v252
    %v372 = vmul.f32 %v147, %v252
    %v373 = vmul.f32 %v148, %v252
    %v374 = vmul.f32 %v149, %v252
    %v375 = vmul.f32 %v150, %v252
    %v376 = vmul.f32 %v151, %v252
    %v377 = vmul.f32 %v152, %v252
    %v378 = vmul.f32 %v153, %v252
    %v379 = vmul.f32 %v154, %v252
    %v380 = vmul.f32 %v155, %v252
    %v381 = vmul.f32 %v156, %v252
    %v382 = vmul.f32 %v157, %v252
    %v383 = vmul.f32 %v158, %v252
    %v384 = vmul.f32 %v159, %v252
    %v385 = vmul.f32 %v160, %v252
    %v386 = vmul.f32 %v161, %v252
    %v387 = vmul.f32 %v162, %v252
    %v388 = vmul.f32 %v163, %v252
    %v389 = vmul.f32 %v164, %v252
    %v390 = vmul.f32 %v165, %v252
    %v391 = vmul.f32 %v166, %v252
    %v392 = vmul.f32 %v167, %v252
    %v393 = vmul.f32 %v168, %v252
    %v394 = vmul.f32 %v169, %v252
    %v395 = vmul.f32 %v170, %v252
    %v396 = vmul.f32 %v171, %v252
    %v397 = vmul.f32 %v172, %v252
    %v398 = vmul.f32 %v173, %v252
    %v399 = vmul.f32 %v174, %v252
    %v400 = vmul.f32 %v175, %v252
    %v401 = vmul.f32 %v176, %v252
    %v402 = vmul.f32 %v177, %v252
    %v403 = vmul.f32 %v178, %v252
    %v404 = vmul.f32 %v179, %v252
    %v405 = vmul.f32 %v180, %v252
    %v406 = vmul.f32 %v181, %v252
    %v407 = vmul.f32 %v182, %v252
    %v408 = vmul.f32 %v183, %v252
    %v409 = vmul.f32 %v184, %v252
    %v410 = vmul.f32 %v185, %v252
    %v411 = vmul.f32 %v186, %v252
    %v412 = vmul.f32 %v187, %v252
    %v413 = vmul.f32 %v188, %v252
    %v414 = vmul.f32 %v189, %v252
    %v415 = vmul.f32 %v190, %v252
    %v416 = vmul.f32 %v191, %v252
    %v417 = vmul.f32 %v192, %v252
    %v418 = vmul.f32 %v193, %v252
    %v419 = vmul.f32 %v194, %v252
    %v420 = vmul.f32 %v195, %v252
    %v421 = vmul.f32 %v196, %v252
    %v422 = vmul.f32 %v197, %v252
    %v423 = vmul.f32 %v198, %v252
    %v424 = vmul.f32 %v199, %v252
    %v425 = vmul.f32 %v200, %v252
    %v426 = vmul.f32 %v201, %v252
    %v427 = vmul.f32 %v202, %v252
    %v428 = vmul.f32 %v203, %v252
    %v429 = vmul.f32 %v204, %v252
    %v430 = vmul.f32 %v205, %v252
    %v431 = vmul.f32 %v206, %v252
    %v432 = vmul.f32 %v207, %v252
    %v433 = vmul.f32 %v208, %v252
    %v434 = vmul.f32 %v209, %v252
    %v435 = vmul.f32 %v210, %v252
    %v436 = vmul.f32 %v211, %v252
    %v437 = vmul.f32 %v212, %v252
    %v438 = vmul.f32 %v213, %v252
    %v439 = vmul.f32 %v214, %v252
    %v440 = vmul.f32 %v215, %v252
    %v441 = vmul.f32 %v216, %v252
    %v442 = vmul.f32 %v217, %v252
    %v443 = vmul.f32 %v218, %v252
    %v444 = vmul.f32 %v219, %v252
    %v445 = vmul.f32 %v220, %v252
    %v446 = vmul.f32 %v221, %v252
    %v447 = vmul.f32 %v222, %v252
    %v448 = vmul.f32 %v223, %v252
    %v449 = vmul.f32 %v224, %v252
    %v450 = vmul.f32 %v225, %v252
    %v451 = vmul.f32 %v226, %v252
    %v452 = vmul.f32 %v227, %v252
    %v453 = vmul.f32 %v228, %v252
    %v454 = vmul.f32 %v229, %v252
    %v455 = vmul.f32 %v230, %v252
    %v456 = vmul.f32 %v231, %v252
    %v457 = vmul.f32 %v232, %v252
    %v458 = vmul.f32 %v233, %v252
    %v459 = vmul.f32 %v234, %v252
    %v460 = vmul.f32 %v235, %v252
    %v461 = vmul.f32 %v236, %v252
    %v462 = vmul.f32 %v237, %v252
    %v463 = vmul.f32 %v238, %v252
    %v464 = vmul.f32 %v239, %v252
    %v465 = vmul.f32 %v240, %v252
    %v466 = vmul.f32 %v241, %v252
    %v467 = vmul.f32 %v242, %v252
    %v468 = vmul.f32 %v243, %v252
    %v469 = vmul.f32 %v244, %v252
    %v470 = vmul.f32 %v245, %v252
    %v471 = vmul.f32 %v246, %v252
    %v472 = vmul.f32 %v247, %v252
    %v473 = vmul.f32 %v248, %v252
    %v474 = vmul.f32 %v249, %v252
    %v475 = vmul.f32 %v250, %v252
    %v476 = vmul.f32 %v251, %v252
    %477 = vst [vmem:[#allocation6] sm:$0xff] %v253
    %478 = vst [vmem:[#allocation6 + $0x8] sm:$0xff] %v254
    %479 = vst [vmem:[#allocation6 + $0x10] sm:$0xff] %v255
    %480 = vst [vmem:[#allocation6 + $0x18] sm:$0xff] %v256
    %481 = vst [vmem:[#allocation6 + $0x20] sm:$0xff] %v257
    %482 = vst [vmem:[#allocation6 + $0x28] sm:$0xff] %v258
    %483 = vst [vmem:[#allocation6 + $0x30] sm:$0xff] %v259
    %484 = vst [vmem:[#allocation6 + $0x38] sm:$0xff] %v260
    %485 = vst [vmem:[#allocation6 + $0x40] sm:$0xff] %v261
    %486 = vst [vmem:[#allocation6 + $0x48] sm:$0xff] %v262
    %487 = vst [vmem:[#allocation6 + $0x50] sm:$0xff] %v263
    %488 = vst [vmem:[#allocation6 + $0x58] sm:$0xff] %v264
    %489 = vst [vmem:[#allocation6 + $0x60] sm:$0xff] %v265
    %490 = vst [vmem:[#allocation6 + $0x68] sm:$0xff] %v266
    %491 = vst [vmem:[#allocation6 + $0x70] sm:$0xff] %v267
    %492 = vst [vmem:[#allocation6 + $0x78] sm:$0xff] %v268
    %493 = vst [vmem:[#allocation6 + $0x80] sm:$0xff] %v269
    %494 = vst [vmem:[#allocation6 + $0x88] sm:$0xff] %v270
    %495 = vst [vmem:[#allocation6 + $0x90] sm:$0xff] %v271
    %496 = vst [vmem:[#allocation6 + $0x98] sm:$0xff] %v272
    %497 = vst [vmem:[#allocation6 + $0xa0] sm:$0xff] %v273
    %498 = vst [vmem:[#allocation6 + $0xa8] sm:$0xff] %v274
    %499 = vst [vmem:[#allocation6 + $0xb0] sm:$0xff] %v275
    %500 = vst [vmem:[#allocation6 + $0xb8] sm:$0xff] %v276
    %501 = vst [vmem:[#allocation6 + $0xc0] sm:$0xff] %v277
    %502 = vst [vmem:[#allocation6 + $0xc8] sm:$0xff] %v278
    %503 = vst [vmem:[#allocation6 + $0xd0] sm:$0xff] %v279
    %504 = vst [vmem:[#allocation6 + $0xd8] sm:$0xff] %v280
    %505 = vst [vmem:[#allocation6 + $0xe0] sm:$0xff] %v281
    %506 = vst [vmem:[#allocation6 + $0xe8] sm:$0xff] %v282
    %507 = vst [vmem:[#allocation6 + $0xf0] sm:$0xff] %v283
    %508 = vst [vmem:[#allocation6 + $0xf8] sm:$0xff] %v284
    %509 = vst [vmem:[#allocation6 + $0x100] sm:$0xff] %v285
    %510 = vst [vmem:[#allocation6 + $0x108] sm:$0xff] %v286
    %511 = vst [vmem:[#allocation6 + $0x110] sm:$0xff] %v287
    %512 = vst [vmem:[#allocation6 + $0x118] sm:$0xff] %v288
    %513 = vst [vmem:[#allocation6 + $0x120] sm:$0xff] %v289
    %514 = vst [vmem:[#allocation6 + $0x128] sm:$0xff] %v290
    %515 = vst [vmem:[#allocation6 + $0x130] sm:$0xff] %v291
    %516 = vst [vmem:[#allocation6 + $0x138] sm:$0xff] %v292
    %517 = vst [vmem:[#allocation6 + $0x140] sm:$0xff] %v293
    %518 = vst [vmem:[#allocation6 + $0x148] sm:$0xff] %v294
    %519 = vst [vmem:[#allocation6 + $0x150] sm:$0xff] %v295
    %520 = vst [vmem:[#allocation6 + $0x158] sm:$0xff] %v296
    %521 = vst [vmem:[#allocation6 + $0x160] sm:$0xff] %v297
    %522 = vst [vmem:[#allocation6 + $0x168] sm:$0xff] %v298
    %523 = vst [vmem:[#allocation6 + $0x170] sm:$0xff] %v299
    %524 = vst [vmem:[#allocation6 + $0x178] sm:$0xff] %v300
    %525 = vst [vmem:[#allocation6 + $0x180] sm:$0xff] %v301
    %526 = vst [vmem:[#allocation6 + $0x188] sm:$0xff] %v302
    %527 = vst [vmem:[#allocation6 + $0x190] sm:$0xff] %v303
    %528 = vst [vmem:[#allocation6 + $0x198] sm:$0xff] %v304
    %529 = vst [vmem:[#allocation6 + $0x1a0] sm:$0xff] %v305
    %530 = vst [vmem:[#allocation6 + $0x1a8] sm:$0xff] %v306
    %531 = vst [vmem:[#allocation6 + $0x1b0] sm:$0xff] %v307
    %532 = vst [vmem:[#allocation6 + $0x1b8] sm:$0xff] %v308
    %533 = vst [vmem:[#allocation6 + $0x1c0] sm:$0xff] %v309
    %534 = vst [vmem:[#allocation6 + $0x1c8] sm:$0xff] %v310
    %535 = vst [vmem:[#allocation6 + $0x1d0] sm:$0xff] %v311
    %536 = vst [vmem:[#allocation6 + $0x1d8] sm:$0xff] %v312
    %537 = vst [vmem:[#allocation6 + $0x1e0] sm:$0xff] %v313
    %538 = vst [vmem:[#allocation6 + $0x1e8] sm:$0xff] %v314
    %539 = vst [vmem:[#allocation6 + $0x1f0] sm:$0xff] %v315
    %540 = vst [vmem:[#allocation6 + $0x1f8] sm:$0xff] %v316
    %541 = vst [vmem:[#allocation6 + $0x200] sm:$0xff] %v317
    %542 = vst [vmem:[#allocation6 + $0x208] sm:$0xff] %v318
    %543 = vst [vmem:[#allocation6 + $0x210] sm:$0xff] %v319
    %544 = vst [vmem:[#allocation6 + $0x218] sm:$0xff] %v320
    %545 = vst [vmem:[#allocation6 + $0x220] sm:$0xff] %v321
    %546 = vst [vmem:[#allocation6 + $0x228] sm:$0xff] %v322
    %547 = vst [vmem:[#allocation6 + $0x230] sm:$0xff] %v323
    %548 = vst [vmem:[#allocation6 + $0x238] sm:$0xff] %v324
    %549 = vst [vmem:[#allocation6 + $0x240] sm:$0xff] %v325
    %550 = vst [vmem:[#allocation6 + $0x248] sm:$0xff] %v326
    %551 = vst [vmem:[#allocation6 + $0x250] sm:$0xff] %v327
    %552 = vst [vmem:[#allocation6 + $0x258] sm:$0xff] %v328
    %553 = vst [vmem:[#allocation6 + $0x260] sm:$0xff] %v329
    %554 = vst [vmem:[#allocation6 + $0x268] sm:$0xff] %v330
    %555 = vst [vmem:[#allocation6 + $0x270] sm:$0xff] %v331
    %556 = vst [vmem:[#allocation6 + $0x278] sm:$0xff] %v332
    %557 = vst [vmem:[#allocation6 + $0x280] sm:$0xff] %v333
    %558 = vst [vmem:[#allocation6 + $0x288] sm:$0xff] %v334
    %559 = vst [vmem:[#allocation6 + $0x290] sm:$0xff] %v335
    %560 = vst [vmem:[#allocation6 + $0x298] sm:$0xff] %v336
    %561 = vst [vmem:[#allocation6 + $0x2a0] sm:$0xff] %v337
    %562 = vst [vmem:[#allocation6 + $0x2a8] sm:$0xff] %v338
    %563 = vst [vmem:[#allocation6 + $0x2b0] sm:$0xff] %v339
    %564 = vst [vmem:[#allocation6 + $0x2b8] sm:$0xff] %v340
    %565 = vst [vmem:[#allocation6 + $0x2c0] sm:$0xff] %v341
    %566 = vst [vmem:[#allocation6 + $0x2c8] sm:$0xff] %v342
    %567 = vst [vmem:[#allocation6 + $0x2d0] sm:$0xff] %v343
    %568 = vst [vmem:[#allocation6 + $0x2d8] sm:$0xff] %v344
    %569 = vst [vmem:[#allocation6 + $0x2e0] sm:$0xff] %v345
    %570 = vst [vmem:[#allocation6 + $0x2e8] sm:$0xff] %v346
    %571 = vst [vmem:[#allocation6 + $0x2f0] sm:$0xff] %v347
    %572 = vst [vmem:[#allocation6 + $0x2f8] sm:$0xff] %v348
    %573 = vst [vmem:[#allocation6 + $0x300] sm:$0xff] %v349
    %574 = vst [vmem:[#allocation6 + $0x308] sm:$0xff] %v350
    %575 = vst [vmem:[#allocation6 + $0x310] sm:$0xff] %v351
    %576 = vst [vmem:[#allocation6 + $0x318] sm:$0xff] %v352
    %577 = vst [vmem:[#allocation6 + $0x320] sm:$0xff] %v353
    %578 = vst [vmem:[#allocation6 + $0x328] sm:$0xff] %v354
    %579 = vst [vmem:[#allocation6 + $0x330] sm:$0xff] %v355
    %580 = vst [vmem:[#allocation6 + $0x338] sm:$0xff] %v356
    %581 = vst [vmem:[#allocation6 + $0x340] sm:$0xff] %v357
    %582 = vst [vmem:[#allocation6 + $0x348] sm:$0xff] %v358
    %583 = vst [vmem:[#allocation6 + $0x350] sm:$0xff] %v359
    %584 = vst [vmem:[#allocation6 + $0x358] sm:$0xff] %v360
    %585 = vst [vmem:[#allocation6 + $0x360] sm:$0xff] %v361
    %586 = vst [vmem:[#allocation6 + $0x368] sm:$0xff] %v362
    %587 = vst [vmem:[#allocation6 + $0x370] sm:$0xff] %v363
    %588 = vst [vmem:[#allocation6 + $0x378] sm:$0xff] %v364
    %589 = vst [vmem:[#allocation6 + $0x380] sm:$0xff] %v365
    %590 = vst [vmem:[#allocation6 + $0x388] sm:$0xff] %v366
    %591 = vst [vmem:[#allocation6 + $0x390] sm:$0xff] %v367
    %592 = vst [vmem:[#allocation6 + $0x398] sm:$0xff] %v368
    %593 = vst [vmem:[#allocation6 + $0x3a0] sm:$0xff] %v369
    %594 = vst [vmem:[#allocation6 + $0x3a8] sm:$0xff] %v370
    %595 = vst [vmem:[#allocation6 + $0x3b0] sm:$0xff] %v371
    %596 = vst [vmem:[#allocation6 + $0x3b8] sm:$0xff] %v372
    %597 = vst [vmem:[#allocation6 + $0x3c0] sm:$0xff] %v373
    %598 = vst [vmem:[#allocation6 + $0x3c8] sm:$0xff] %v374
    %599 = vst [vmem:[#allocation6 + $0x3d0] sm:$0xff] %v375
    %600 = vst [vmem:[#allocation6 + $0x3d8] sm:$0xff] %v376
    %601 = vst [vmem:[#allocation6 + $0x3e0] sm:$0xff] %v377
    %602 = vst [vmem:[#allocation6 + $0x3e8] sm:$0xff] %v378
    %603 = vst [vmem:[#allocation6 + $0x3f0] sm:$0xff] %v379
    %604 = vst [vmem:[#allocation6 + $0x3f8] sm:$0xff] %v380
    %605 = vst [vmem:[#allocation6 + $0x400] sm:$0xff] %v381
    %606 = vst [vmem:[#allocation6 + $0x408] sm:$0xff] %v382
    %607 = vst [vmem:[#allocation6 + $0x410] sm:$0xff] %v383
    %608 = vst [vmem:[#allocation6 + $0x418] sm:$0xff] %v384
    %609 = vst [vmem:[#allocation6 + $0x420] sm:$0xff] %v385
    %610 = vst [vmem:[#allocation6 + $0x428] sm:$0xff] %v386
    %611 = vst [vmem:[#allocation6 + $0x430] sm:$0xff] %v387
    %612 = vst [vmem:[#allocation6 + $0x438] sm:$0xff] %v388
    %613 = vst [vmem:[#allocation6 + $0x440] sm:$0xff] %v389
    %614 = vst [vmem:[#allocation6 + $0x448] sm:$0xff] %v390
    %615 = vst [vmem:[#allocation6 + $0x450] sm:$0xff] %v391
    %616 = vst [vmem:[#allocation6 + $0x458] sm:$0xff] %v392
    %617 = vst [vmem:[#allocation6 + $0x460] sm:$0xff] %v393
    %618 = vst [vmem:[#allocation6 + $0x468] sm:$0xff] %v394
    %619 = vst [vmem:[#allocation6 + $0x470] sm:$0xff] %v395
    %620 = vst [vmem:[#allocation6 + $0x478] sm:$0xff] %v396
    %621 = vst [vmem:[#allocation6 + $0x480] sm:$0xff] %v397
    %622 = vst [vmem:[#allocation6 + $0x488] sm:$0xff] %v398
    %623 = vst [vmem:[#allocation6 + $0x490] sm:$0xff] %v399
    %624 = vst [vmem:[#allocation6 + $0x498] sm:$0xff] %v400
    %625 = vst [vmem:[#allocation6 + $0x4a0] sm:$0xff] %v401
    %626 = vst [vmem:[#allocation6 + $0x4a8] sm:$0xff] %v402
    %627 = vst [vmem:[#allocation6 + $0x4b0] sm:$0xff] %v403
    %628 = vst [vmem:[#allocation6 + $0x4b8] sm:$0xff] %v404
    %629 = vst [vmem:[#allocation6 + $0x4c0] sm:$0xff] %v405
    %630 = vst [vmem:[#allocation6 + $0x4c8] sm:$0xff] %v406
    %631 = vst [vmem:[#allocation6 + $0x4d0] sm:$0xff] %v407
    %632 = vst [vmem:[#allocation6 + $0x4d8] sm:$0xff] %v408
    %633 = vst [vmem:[#allocation6 + $0x4e0] sm:$0xff] %v409
    %634 = vst [vmem:[#allocation6 + $0x4e8] sm:$0xff] %v410
    %635 = vst [vmem:[#allocation6 + $0x4f0] sm:$0xff] %v411
    %636 = vst [vmem:[#allocation6 + $0x4f8] sm:$0xff] %v412
    %637 = vst [vmem:[#allocation6 + $0x500] sm:$0xff] %v413
    %638 = vst [vmem:[#allocation6 + $0x508] sm:$0xff] %v414
    %639 = vst [vmem:[#allocation6 + $0x510] sm:$0xff] %v415
    %640 = vst [vmem:[#allocation6 + $0x518] sm:$0xff] %v416
    %641 = vst [vmem:[#allocation6 + $0x520] sm:$0xff] %v417
    %642 = vst [vmem:[#allocation6 + $0x528] sm:$0xff] %v418
    %643 = vst [vmem:[#allocation6 + $0x530] sm:$0xff] %v419
    %644 = vst [vmem:[#allocation6 + $0x538] sm:$0xff] %v420
    %645 = vst [vmem:[#allocation6 + $0x540] sm:$0xff] %v421
    %646 = vst [vmem:[#allocation6 + $0x548] sm:$0xff] %v422
    %647 = vst [vmem:[#allocation6 + $0x550] sm:$0xff] %v423
    %648 = vst [vmem:[#allocation6 + $0x558] sm:$0xff] %v424
    %649 = vst [vmem:[#allocation6 + $0x560] sm:$0xff] %v425
    %650 = vst [vmem:[#allocation6 + $0x568] sm:$0xff] %v426
    %651 = vst [vmem:[#allocation6 + $0x570] sm:$0xff] %v427
    %652 = vst [vmem:[#allocation6 + $0x578] sm:$0xff] %v428
    %653 = vst [vmem:[#allocation6 + $0x580] sm:$0xff] %v429
    %654 = vst [vmem:[#allocation6 + $0x588] sm:$0xff] %v430
    %655 = vst [vmem:[#allocation6 + $0x590] sm:$0xff] %v431
    %656 = vst [vmem:[#allocation6 + $0x598] sm:$0xff] %v432
    %657 = vst [vmem:[#allocation6 + $0x5a0] sm:$0xff] %v433
    %658 = vst [vmem:[#allocation6 + $0x5a8] sm:$0xff] %v434
    %659 = vst [vmem:[#allocation6 + $0x5b0] sm:$0xff] %v435
    %660 = vst [vmem:[#allocation6 + $0x5b8] sm:$0xff] %v436
    %661 = vst [vmem:[#allocation6 + $0x5c0] sm:$0xff] %v437
    %662 = vst [vmem:[#allocation6 + $0x5c8] sm:$0xff] %v438
    %663 = vst [vmem:[#allocation6 + $0x5d0] sm:$0xff] %v439
    %664 = vst [vmem:[#allocation6 + $0x5d8] sm:$0xff] %v440
    %665 = vst [vmem:[#allocation6 + $0x5e0] sm:$0xff] %v441
    %666 = vst [vmem:[#allocation6 + $0x5e8] sm:$0xff] %v442
    %667 = vst [vmem:[#allocation6 + $0x5f0] sm:$0xff] %v443
    %668 = vst [vmem:[#allocation6 + $0x5f8] sm:$0xff] %v444
    %669 = vst [vmem:[#allocation6 + $0x600] sm:$0xff] %v445
    %670 = vst [vmem:[#allocation6 + $0x608] sm:$0xff] %v446
    %671 = vst [vmem:[#allocation6 + $0x610] sm:$0xff] %v447
    %672 = vst [vmem:[#allocation6 + $0x618] sm:$0xff] %v448
    %673 = vst [vmem:[#allocation6 + $0x620] sm:$0xff] %v449
    %674 = vst [vmem:[#allocation6 + $0x628] sm:$0xff] %v450
    %675 = vst [vmem:[#allocation6 + $0x630] sm:$0xff] %v451
    %676 = vst [vmem:[#allocation6 + $0x638] sm:$0xff] %v452
    %677 = vst [vmem:[#allocation6 + $0x640] sm:$0xff] %v453
    %678 = vst [vmem:[#allocation6 + $0x648] sm:$0xff] %v454
    %679 = vst [vmem:[#allocation6 + $0x650] sm:$0xff] %v455
    %680 = vst [vmem:[#allocation6 + $0x658] sm:$0xff] %v456
    %681 = vst [vmem:[#allocation6 + $0x660] sm:$0xff] %v457
    %682 = vst [vmem:[#allocation6 + $0x668] sm:$0xff] %v458
    %683 = vst [vmem:[#allocation6 + $0x670] sm:$0xff] %v459
    %684 = vst [vmem:[#allocation6 + $0x678] sm:$0xff] %v460
    %685 = vst [vmem:[#allocation6 + $0x680] sm:$0xff] %v461
    %686 = vst [vmem:[#allocation6 + $0x688] sm:$0xff] %v462
    %687 = vst [vmem:[#allocation6 + $0x690] sm:$0xff] %v463
    %688 = vst [vmem:[#allocation6 + $0x698] sm:$0xff] %v464
    %689 = vst [vmem:[#allocation6 + $0x6a0] sm:$0xff] %v465
    %690 = vst [vmem:[#allocation6 + $0x6a8] sm:$0xff] %v466
    %691 = vst [vmem:[#allocation6 + $0x6b0] sm:$0xff] %v467
    %692 = vst [vmem:[#allocation6 + $0x6b8] sm:$0xff] %v468
    %693 = vst [vmem:[#allocation6 + $0x6c0] sm:$0xff] %v469
    %694 = vst [vmem:[#allocation6 + $0x6c8] sm:$0xff] %v470
    %695 = vst [vmem:[#allocation6 + $0x6d0] sm:$0xff] %v471
    %696 = vst [vmem:[#allocation6 + $0x6d8] sm:$0xff] %v472
    %697 = vst [vmem:[#allocation6 + $0x6e0] sm:$0x1] %v473
    %698 = vst [vmem:[#allocation6 + $0x6e8] sm:$0x1] %v474
    %699 = vst [vmem:[#allocation6 + $0x6f0] sm:$0x1] %v475
    %700 = vst [vmem:[#allocation6 + $0x6f8] sm:$0x1] %v476
    // Predicated region
    $region14: #{tpu_custom_call.1} parent=1 // pred_check
      _
    $region15: #{tpu_custom_call.1} parent=1 // pred_check_branch
      %702 = sbr.rel (0) target = $region17
    $region16: #{tpu_custom_call.1} parent=1 // pred_region
      %s704 = ssub.s32 28672, 28672
      %705 = vsyncadd [#allocation5], %s704
      %s706 = sshll.u32 [#allocation6], 4
      %s707 = int_to_ptr.vmem [resolvable:$true] %s706
      %712 = dma.vmem_to_hbm [thread:$0]  %s707, 28672, %s2, [#allocation5], 512, 512, 32
    $region17: #{tpu_custom_call.1} parent=1 // pred_fallthru
      _
    // Predicated region
    $region18: #{tpu_custom_call.1} parent=1 // pred_check
      _
    $region19: #{tpu_custom_call.1} parent=1 // pred_check_branch
      %714 = sbr.rel (0) target = $region21
    $region20: #{tpu_custom_call.1} parent=1 // pred_region
      %715 = dma.done [#allocation5], 28672
    $region21: #{tpu_custom_call.1} parent=1 // pred_fallthru
      _
    %716 = vsyncpa [#allocation4], 1
    %717 = vsyncpa [#allocation5], 1

</llo_original>
